<compile_context>
chip_gen: v7x
topology: tpu7x:2x2x1
jax: 0.10.0
libtpu: 0.0.40
codegen_flags: <defaults>
</compile_context>

<pallas_src>
import functools

import jax
import jax.numpy as jnp
from jax.experimental import pallas as pl
from jax.experimental.pallas import tpu as pltpu


def _swish_kernel(x_ref, o_ref):
    # f32 compute: stable sigmoid, valid on every generation; cast on store.
    xf = x_ref[...].astype(jnp.float32)
    o_ref[...] = (xf * jax.nn.sigmoid(xf)).astype(o_ref.dtype)


def _round_up(n: int, m: int) -> int:
    return ((n + m - 1) // m) * m


@functools.lru_cache(maxsize=1)
def _chip_info():
    """Returns (num_tensorcores, target_block_bytes) for the local TPU."""
    kind = ""
    try:
        kind = (jax.devices()[0].device_kind or "").lower()
    except Exception:
        pass
    is_v7 = ("v7" in kind) or ("7x" in kind)
    is_v6 = "v6" in kind
    num_tc = 2 if is_v7 else 1
    # v6e/v7x: ~4 MiB blocks (in+out, double-buffered = 16 MiB, inside the
    # 32 MiB scoped-VMEM default; well under v7x's 64 MiB physical VMEM).
    # v5e / unknown: ~2 MiB blocks (8 MiB pipeline VMEM, safe at 16 MiB scoped).
    target_bytes = (4 * 1024 * 1024) if (is_v6 or is_v7) else (2 * 1024 * 1024)
    return num_tc, target_bytes


def _swish_ragged_1d(flat, total, itemsize, sub, cost):
    """Pad-free path for totals that are not a multiple of 128.

    Runs over the flat 1D array; the last (ragged) block is masked by Pallas.
    Blocks are kept modest (~256 KiB) since 1D vreg packing is less dense and
    this path is rare.
    """
    dtype = flat.dtype
    lane_block = sub * 128  # always a multiple of 8*128
    max_block = max(lane_block, ((256 * 1024) // itemsize) // lane_block * lane_block)
    if total <= max_block:
        block_len = total          # full-dim block: exempt from (8,128) rule
    else:
        block_len = max_block      # multiple of 8*128: ragged last block masked
    grid = (pl.cdiv(total, block_len),)

    return pl.pallas_call(
        _swish_kernel,
        out_shape=jax.ShapeDtypeStruct((total,), dtype),
        grid_spec=pltpu.PrefetchScalarGridSpec(
            num_scalar_prefetch=0,
            grid=grid,
            in_specs=[pl.BlockSpec((block_len,), lambda i: (i,))],
            out_specs=pl.BlockSpec((block_len,), lambda i: (i,)),
        ),
        compiler_params=pltpu.CompilerParams(
            dimension_semantics=("parallel",),
        ),
        cost_estimate=cost,
    )(flat)


def swish(x: jax.Array) -> jax.Array:
    """Elementwise Swish: x * sigmoid(x), for floating-point inputs."""
    orig_shape = x.shape
    orig_dtype = x.dtype
    if not jnp.issubdtype(orig_dtype, jnp.floating):
        raise TypeError(f"swish expects a floating dtype, got {orig_dtype}")
    total = int(x.size)
    if total == 0:
        return x

    itemsize = jnp.dtype(orig_dtype).itemsize
    # Sublane packing granularity: f32 -> 8, bf16/f16 -> 16, fp8 -> 32.
    sub = {4: 8, 2: 16, 1: 32}.get(itemsize, 8)

    num_tc, target_block_bytes = _chip_info()

    cost = pl.CostEstimate(
        flops=4 * total,
        transcendentals=total,
        bytes_accessed=2 * total * itemsize,
    )

    flat = jnp.ravel(x)  # metadata-only for default (row-major) layouts

    # Widest lane dim (multiple of 128) that divides the flat length -> no pad,
    # metadata-only reshape, long unmasked lane-dense stores.  Prefer widths
    # that keep at least one sublane-granule of rows; otherwise take any
    # divisor width from the narrower list.
    W = None
    for cand in (8192, 4096, 2048, 1024, 512, 256, 128):
        if total % cand == 0 and total // cand >= sub:
            W = cand
            break
    if W is None:
        for cand in (1024, 512, 256, 128):
            if total % cand == 0:
                W = cand
                break

    if W is None:
        # Ragged total: masked 1D path, no pad / slice, no extra HBM traffic.
        return _swish_ragged_1d(flat, total, itemsize, sub, cost).reshape(orig_shape)

    rows = total // W
    x2d = flat.reshape(rows, W)

    if rows <= sub:
        # Tiny input: one block covering the full array (full-extent blocks are
        # exempt from the (8,128) divisibility rule).
        tile_rows = rows
    else:
        # Generation-tuned block bytes, multiple of the sublane granularity.
        tile_rows = max(sub, (target_block_bytes // (W * itemsize)) // sub * sub)
        tile_rows = min(tile_rows, _round_up(rows, sub))
        if num_tc > 1:
            # v7x megacore: aim for >= 2 blocks per TensorCore so both cores
            # keep DMA-in / compute / DMA-out overlap and stay balanced.
            min_steps = 2 * num_tc
            if pl.cdiv(rows, tile_rows) < min_steps:
                tile_rows = max(sub, _round_up(pl.cdiv(rows, min_steps), sub))
        # On 1-TC chips (v5e/v6e) never force a split: the grid is a serial
        # loop, so extra steps are pure ~0.35 us/step overhead.

    grid = (pl.cdiv(rows, tile_rows),)

    out2d = pl.pallas_call(
        _swish_kernel,
        out_shape=jax.ShapeDtypeStruct((rows, W), orig_dtype),
        grid_spec=pltpu.PrefetchScalarGridSpec(
            num_scalar_prefetch=0,
            grid=grid,
            in_specs=[pl.BlockSpec((tile_rows, W), lambda i: (i, 0))],
            out_specs=pl.BlockSpec((tile_rows, W), lambda i: (i, 0)),
        ),
        compiler_params=pltpu.CompilerParams(
            dimension_semantics=("parallel",),
        ),
        cost_estimate=cost,
    )(x2d)

    return out2d.reshape(orig_shape)


if __name__ == "__main__":
    key = jax.random.PRNGKey(0)
    # NCHW input, small shapes: batch=2, channels=4, spatial=16x16.
    x = jax.random.normal(key, (2, 4, 16, 16), dtype=jnp.float32)

    y = jax.block_until_ready(swish(x))

    # Reference check against plain JAX.
    y_ref = x * jax.nn.sigmoid(x)
    assert y.shape == x.shape and y.dtype == x.dtype
    assert jnp.allclose(y, y_ref, atol=1e-6, rtol=1e-6)

    print("KERNEL_OK")
</pallas_src>

<mosaic_0001>
module attributes {stable_mosaic.version = 11 : i64} {
  func.func @_swish_kernel(%arg0: i32, %arg1: memref<8x256xf32, #tpu.memory_space<vmem>>, %arg2: memref<8x256xf32, #tpu.memory_space<vmem>>) attributes {dimension_semantics = [#tpu.dimension_semantics<parallel>], iteration_bounds = array<i64: 1>, scalar_prefetch = 0 : i64, scratch_operands = 0 : i64, tpu.core_type = #tpu.core_type<tc>, window_params = [{transform_indices = @transform_0, window_bounds = array<i64: 8, 256>}, {transform_indices = @transform_1, window_bounds = array<i64: 8, 256>}]} {
    %c0 = arith.constant 0 : index
    %c0_0 = arith.constant 0 : index
    %0 = vector.load %arg1[%c0, %c0_0] : memref<8x256xf32, #tpu.memory_space<vmem>>, vector<8x256xf32>
    %1 = arith.negf %0 : vector<8x256xf32>
    %2 = math.exp %1 : vector<8x256xf32>
    %cst = arith.constant 1.000000e+00 : f32
    %3 = vector.broadcast %cst : f32 to vector<8x256xf32>
    %4 = arith.addf %3, %2 : vector<8x256xf32>
    %5 = arith.divf %3, %4 : vector<8x256xf32>
    %6 = arith.mulf %0, %5 : vector<8x256xf32>
    %c0_1 = arith.constant 0 : index
    %c0_2 = arith.constant 0 : index
    %7 = vector.load %arg2[%c0_1, %c0_2] : memref<8x256xf32, #tpu.memory_space<vmem>>, vector<8x256xf32>
    tpu.vector_store %arg2[%c0_1, %c0_2], %6 {strides = array<i32>} : memref<8x256xf32, #tpu.memory_space<vmem>>, vector<8x256xf32>,
    return
  }
  func.func @transform_0(%arg0: i32) -> (i32, i32) {
    %c0_i32 = arith.constant 0 : i32
    %c0_i32_0 = arith.constant 0 : i32
    return %arg0, %c0_i32 : i32, i32
  }
  func.func @transform_1(%arg0: i32) -> (i32, i32) {
    %c0_i32 = arith.constant 0 : i32
    %c0_i32_0 = arith.constant 0 : i32
    return %arg0, %c0_i32 : i32, i32
  }
}

</mosaic_0001>

<llo_original>
// kernel: tpu_custom_call.1
$region0: #{tpu_custom_call.1}
  #allocation0 [shape = 'u32[]', space=smem, size = 0x4, offset = 0x4, fixed_abs, tag = 'smem constant byte address 0x4 - core index']
  #allocation1 [shape = 'u32[144,128]{1,0:T(1,128)}', space=vmem, size = 0x12000, scoped, tag = 'internal scratch']
  %s0 = inlined_call_operand.hbm [shape: f32[8,256], index: 0, kind: input, shape index: {}]
  %s1 = inlined_call_operand.hbm [shape: f32[8,256], index: 1, kind: output, shape index: {}]
  %s2 = sld [smem:[#allocation0]]
  $region18: #{tpu_custom_call.1} parent=0
    _
  %s4 = ssub.s32 1, %s2
  %s5 = scalar_select 0, %s4, %s2
  $region1: #{tpu_custom_call.1} parent=0
    #allocation2 [shape = 'u8[8192]{0}', space=vmem, size = 0x2000, scoped, tag = 'input window, operand 0, single buffered']
    #allocation3 [shape = 's32[1]{0}', space=sflag, size = 0x4, scoped, tag = 'scoped memory for tpu_custom_call.1']
    #allocation4 [shape = 's32[1]{0}', space=sflag, size = 0x4, scoped, tag = 'scoped memory for tpu_custom_call.1']
    #allocation5 [shape = 'u8[8192]{0}', space=vmem, size = 0x2000, scoped, tag = 'output window, operand 0, single buffered']
    %6 = vsyncpa [#allocation3], 0
    %7 = vsyncpa [#allocation4], 0
    // Predicated region
    $region2: #{tpu_custom_call.1} parent=1 // pred_check
      _
    $region3: #{tpu_custom_call.1} parent=1 // pred_check_branch
      %9 = sbr.rel (0) target = $region5
    $region4: #{tpu_custom_call.1} parent=1 // pred_region
      %s11 = ssub.s32 256, 256
      %12 = vsyncadd [#allocation3], %s11
      %s14 = sshll.u32 [#allocation2], 4
      %s15 = int_to_ptr.vmem [resolvable:$true] %s14
      %17 = dma.hbm_to_vmem [thread:$0]  %s0, 256, %s15, [#allocation3]
    $region5: #{tpu_custom_call.1} parent=1 // pred_fallthru
      _
    // Predicated region
    $region6: #{tpu_custom_call.1} parent=1 // pred_check
      _
    $region7: #{tpu_custom_call.1} parent=1 // pred_check_branch
      %19 = sbr.rel (0) target = $region9
    $region8: #{tpu_custom_call.1} parent=1 // pred_region
      %20 = dma.done [#allocation3], 256
    $region9: #{tpu_custom_call.1} parent=1 // pred_fallthru
      _
    %v21 = vld [vmem:[#allocation2] sm:$0xff]
    %v22 = vld [vmem:[#allocation2 + $0x8] sm:$0xff]
    %v23 = vxor.u32 %v21, 2147483648
    %v24 = vxor.u32 %v22, 2147483648
    %v25 = vmul.f32 %v23, 1.442695
    %v26 = vpow.pop %v25
    %v27 = vmul.f32 %v24, 1.442695
    %v28 = vpow.pop %v27
    %v29 = vadd.f32 %v26, 1.0
    %v30 = vadd.f32 %v28, 1.0
    %v31 = vrcp.pop %v29
    %v32 = vmul.f32 1.0, %v31
    %v33 = vrcp.pop %v30
    %v34 = vmul.f32 1.0, %v33
    %v35 = vmul.f32 %v21, %v32
    %v36 = vmul.f32 %v22, %v34
    %37 = vst [vmem:[#allocation5] sm:$0xff] %v35
    %38 = vst [vmem:[#allocation5 + $0x8] sm:$0xff] %v36
    // Predicated region
    $region10: #{tpu_custom_call.1} parent=1 // pred_check
      _
    $region11: #{tpu_custom_call.1} parent=1 // pred_check_branch
      %40 = sbr.rel (0) target = $region13
    $region12: #{tpu_custom_call.1} parent=1 // pred_region
      %s42 = ssub.s32 256, 256
      %43 = vsyncadd [#allocation4], %s42
      %s45 = sshll.u32 [#allocation5], 4
      %s46 = int_to_ptr.vmem [resolvable:$true] %s45
      %48 = dma.vmem_to_hbm [thread:$0]  %s46, 256, %s1, [#allocation4]
    $region13: #{tpu_custom_call.1} parent=1 // pred_fallthru
      _
    // Predicated region
    $region14: #{tpu_custom_call.1} parent=1 // pred_check
      _
    $region15: #{tpu_custom_call.1} parent=1 // pred_check_branch
      %50 = sbr.rel (0) target = $region17
    $region16: #{tpu_custom_call.1} parent=1 // pred_region
      %51 = dma.done [#allocation4], 256
    $region17: #{tpu_custom_call.1} parent=1 // pred_fallthru
      _
    %52 = vsyncpa [#allocation3], 1
    %53 = vsyncpa [#allocation4], 1

</llo_original>
